<compile_context>
chip_gen: v7x
topology: tpu7x:2x2x1
jax: 0.10.0
libtpu: 0.0.40
codegen_flags: <defaults>
</compile_context>

<pallas_src>
import math
import functools

import jax
import jax.numpy as jnp
from jax.experimental import pallas as pl
from jax.experimental.pallas import tpu as pltpu


_MIN_PARALLEL_TILE_BYTES = 2 * 1024 * 1024   # don't shrink tiles below this for core balance
_VMEM_FALLBACK_BYTES = 64 * 1024 * 1024      # conservative (v7x per-TC) if query fails
_VMEM_LIMIT_CAP_BYTES = 96 * 1024 * 1024


def _papernorm_kernel(x_ref, o_ref, *, scale):
    # Row-wise L2 norm with f32 accumulation, then one elementwise scale.
    # The f32 multiply + single cast fuse into the store (no bf16 scale
    # quantization, no extra full-tile temp beyond what Mosaic keeps anyway).
    x = x_ref[...]                                       # (tile_rows, hidden)
    xf = x.astype(jnp.float32)
    sq_sum = jnp.sum(xf * xf, axis=-1, keepdims=True)    # (tile_rows, 1) f32
    r = scale * jax.lax.rsqrt(sq_sum)                    # sqrt(H) / ||x||, folded
    o_ref[...] = (xf * r).astype(o_ref.dtype)


def _vmem_limit_bytes():
    """Generation-aware scoped-VMEM budget (leave headroom for Mosaic scratch)."""
    try:
        cap = int(pltpu.get_tpu_info().vmem_capacity_bytes)
    except Exception:
        cap = _VMEM_FALLBACK_BYTES
    return min(int(cap * 0.70), _VMEM_LIMIT_CAP_BYTES)


def _round_down_8(n):
    return (n // 8) * 8


def _pick_tile_rows(rows, hidden, itemsize, vmem_limit):
    """Largest sublane-aligned row tile that fits the VMEM budget.

    Budget per row across live buffers: 2x input + 2x output (double-buffered,
    input dtype) + ~2 f32 temps that Mosaic may materialize for the upcast and
    the scaled product.
    """
    if rows <= 8:
        return rows                                   # single full block

    per_row_bytes = hidden * (4 * itemsize + 8)
    tr = vmem_limit // per_row_bytes
    if tr < 8:
        # TODO(synk): for very wide `hidden`, split the reduction over a second
        # 'arbitrary' grid axis with an f32 (tr, 1) accumulator + finalize step.
        raise ValueError(
            f"hidden={hidden} too wide: an (8, hidden) tile exceeds the VMEM "
            f"budget ({vmem_limit} bytes) on this TPU generation.")
    tr = _round_down_8(min(tr, rows))

    # Megacore balance (v7x has 2 TCs sharing the "parallel" grid axis): aim
    # for >= ~4 blocks as long as tiles stay large enough to amortize the
    # ~0.35us per-step overhead.  Harmless on single-TC v5e/v6e.
    quarter = _round_down_8(rows // 4)
    if quarter >= 8 and quarter * hidden * itemsize >= _MIN_PARALLEL_TILE_BYTES:
        tr = min(tr, quarter)

    # Prefer an exact divisor of `rows` (no ragged last block) if one exists
    # without shrinking the tile by more than 2x; otherwise keep `tr` and rely
    # on Pallas's masked last block (OOB rows are independent and never stored).
    for cand in range(tr, max(tr // 2, 8) - 1, -8):
        if rows % cand == 0:
            return cand
    return tr


def paper_norm(x, hidden_size=None, *, tile_rows=None):
    """JAX/Pallas equivalent of PaperNorm.forward.

    x: array of shape (..., hidden); normalization over the last axis.
    Note: all-zero rows produce inf/NaN (rsqrt(0)), matching the PyTorch module.
    """
    orig_shape = x.shape
    hidden = orig_shape[-1]
    if hidden_size is None:
        hidden_size = hidden
    scale = math.sqrt(hidden_size)

    if x.size == 0:
        return x                                        # nothing to normalize

    rows = 1
    for d in orig_shape[:-1]:
        rows *= d
    x2d = x.reshape(rows, hidden)

    vmem_limit = _vmem_limit_bytes()
    tr = tile_rows if tile_rows is not None else _pick_tile_rows(
        rows, hidden, jnp.dtype(x.dtype).itemsize, vmem_limit)
    n_blocks = pl.cdiv(rows, tr)

    out2d = pl.pallas_call(
        functools.partial(_papernorm_kernel, scale=scale),
        out_shape=jax.ShapeDtypeStruct((rows, hidden), x.dtype),
        grid_spec=pltpu.PrefetchScalarGridSpec(
            num_scalar_prefetch=0,
            grid=(n_blocks,),
            in_specs=[pl.BlockSpec((tr, hidden), lambda i: (i, 0))],
            out_specs=pl.BlockSpec((tr, hidden), lambda i: (i, 0)),
        ),
        compiler_params=pltpu.CompilerParams(
            dimension_semantics=("parallel",),
            vmem_limit_bytes=vmem_limit,
        ),
    )(x2d)

    return out2d.reshape(orig_shape)


def _reference(x, hidden_size):
    nrm = jnp.sqrt(jnp.sum(x.astype(jnp.float32) ** 2, axis=-1, keepdims=True))
    return (math.sqrt(hidden_size) * x.astype(jnp.float32) / nrm).astype(x.dtype)


if __name__ == "__main__":
    key = jax.random.PRNGKey(0)

    # Small shape consistent with the module: batch=2, seq=8, hidden=32.
    batch, seq, hidden = 2, 8, 32
    x = jax.random.normal(key, (batch, seq, hidden), dtype=jnp.float32)
    out = jax.block_until_ready(paper_norm(x, hidden_size=hidden))
    ref = _reference(x, hidden)
    assert out.shape == x.shape and out.dtype == x.dtype
    assert jnp.allclose(out, ref, atol=1e-5, rtol=1e-5), "mismatch vs reference (f32)"

    # Ragged row count (rows=111 not a multiple of 8) -> masked last block path,
    # no padding / slicing passes over HBM.
    x2 = jax.random.normal(jax.random.PRNGKey(1), (3, 37, 256), dtype=jnp.float32)
    out2 = jax.block_until_ready(paper_norm(x2))
    ref2 = _reference(x2, 256)
    assert jnp.allclose(out2, ref2, atol=1e-5, rtol=1e-5), "mismatch vs reference (ragged)"

    # bf16 path: scale applied in f32, single cast into the output.
    x3 = jax.random.normal(jax.random.PRNGKey(2), (4, 8, 128), dtype=jnp.bfloat16)
    out3 = jax.block_until_ready(paper_norm(x3))
    ref3 = _reference(x3, 128)
    assert jnp.allclose(out3.astype(jnp.float32), ref3.astype(jnp.float32),
                        atol=2e-2, rtol=2e-2), "mismatch vs reference (bf16)"

    print("KERNEL_OK")
</pallas_src>

<mosaic_0001>
module attributes {stable_mosaic.version = 11 : i64} {
  func.func @_papernorm_kernel(%arg0: i32, %arg1: memref<16x32xf32, #tpu.memory_space<vmem>>, %arg2: memref<16x32xf32, #tpu.memory_space<vmem>>) attributes {dimension_semantics = [#tpu.dimension_semantics<parallel>], iteration_bounds = array<i64: 1>, scalar_prefetch = 0 : i64, scratch_operands = 0 : i64, tpu.core_type = #tpu.core_type<tc>, window_params = [{transform_indices = @transform_0, window_bounds = array<i64: 16, 32>}, {transform_indices = @transform_1, window_bounds = array<i64: 16, 32>}]} {
    %c0 = arith.constant 0 : index
    %c0_0 = arith.constant 0 : index
    %0 = vector.load %arg1[%c0, %c0_0] : memref<16x32xf32, #tpu.memory_space<vmem>>, vector<16x32xf32>
    %1 = arith.mulf %0, %0 : vector<16x32xf32>
    %cst = arith.constant dense<0.000000e+00> : vector<16xf32>
    %2 = vector.multi_reduction <add>, %1, %cst [1] : vector<16x32xf32> to vector<16xf32>
    %3 = vector.shape_cast %2 : vector<16xf32> to vector<16x1xf32>
    %4 = math.rsqrt %3 : vector<16x1xf32>
    %cst_1 = arith.constant 5.65685415 : f32
    %5 = vector.broadcast %cst_1 : f32 to vector<16x1xf32>
    %6 = arith.mulf %5, %4 : vector<16x1xf32>
    %7 = vector.broadcast %6 : vector<16x1xf32> to vector<16x32xf32>
    %8 = arith.mulf %0, %7 : vector<16x32xf32>
    %c0_2 = arith.constant 0 : index
    %c0_3 = arith.constant 0 : index
    %9 = vector.load %arg2[%c0_2, %c0_3] : memref<16x32xf32, #tpu.memory_space<vmem>>, vector<16x32xf32>
    tpu.vector_store %arg2[%c0_2, %c0_3], %8 {strides = array<i32>} : memref<16x32xf32, #tpu.memory_space<vmem>>, vector<16x32xf32>,
    return
  }
  func.func @transform_0(%arg0: i32) -> (i32, i32) {
    %c0_i32 = arith.constant 0 : i32
    %c0_i32_0 = arith.constant 0 : i32
    return %arg0, %c0_i32 : i32, i32
  }
  func.func @transform_1(%arg0: i32) -> (i32, i32) {
    %c0_i32 = arith.constant 0 : i32
    %c0_i32_0 = arith.constant 0 : i32
    return %arg0, %c0_i32 : i32, i32
  }
}

</mosaic_0001>

<llo_original>
// kernel: tpu_custom_call.1
$region0: #{tpu_custom_call.1}
  #allocation0 [shape = 'u32[]', space=smem, size = 0x4, offset = 0x4, fixed_abs, tag = 'smem constant byte address 0x4 - core index']
  #allocation1 [shape = 'u32[144,128]{1,0:T(1,128)}', space=vmem, size = 0x12000, scoped, tag = 'internal scratch']
  %s0 = inlined_call_operand.hbm [shape: f32[16,32], index: 0, kind: input, shape index: {}]
  %s1 = inlined_call_operand.hbm [shape: f32[16,32], index: 1, kind: output, shape index: {}]
  %s2 = sld [smem:[#allocation0]]
  $region18: #{tpu_custom_call.1} parent=0
    _
  %s4 = ssub.s32 1, %s2
  %s5 = scalar_select 0, %s4, %s2
  $region1: #{tpu_custom_call.1} parent=0
    #allocation2 [shape = 'u8[8192]{0}', space=vmem, size = 0x2000, scoped, tag = 'input window, operand 0, single buffered']
    #allocation3 [shape = 's32[1]{0}', space=sflag, size = 0x4, scoped, tag = 'scoped memory for tpu_custom_call.1']
    #allocation4 [shape = 's32[1]{0}', space=sflag, size = 0x4, scoped, tag = 'scoped memory for tpu_custom_call.1']
    #allocation5 [shape = 'u8[8192]{0}', space=vmem, size = 0x2000, scoped, tag = 'output window, operand 0, single buffered']
    %6 = vsyncpa [#allocation3], 0
    %7 = vsyncpa [#allocation4], 0
    // Predicated region
    $region2: #{tpu_custom_call.1} parent=1 // pred_check
      _
    $region3: #{tpu_custom_call.1} parent=1 // pred_check_branch
      %9 = sbr.rel (0) target = $region5
    $region4: #{tpu_custom_call.1} parent=1 // pred_region
      %s11 = ssub.s32 256, 256
      %12 = vsyncadd [#allocation3], %s11
      %s13 = sshll.u32 [#allocation2], 4
      %s14 = int_to_ptr.vmem [resolvable:$true] %s13
      %19 = dma.hbm_to_vmem [thread:$0]  %s0, 256, %s14, [#allocation3], 128, 128, 8
    $region5: #{tpu_custom_call.1} parent=1 // pred_fallthru
      _
    // Predicated region
    $region6: #{tpu_custom_call.1} parent=1 // pred_check
      _
    $region7: #{tpu_custom_call.1} parent=1 // pred_check_branch
      %21 = sbr.rel (0) target = $region9
    $region8: #{tpu_custom_call.1} parent=1 // pred_region
      %22 = dma.done [#allocation3], 256
    $region9: #{tpu_custom_call.1} parent=1 // pred_fallthru
      _
    %v23 = vld [vmem:[#allocation2] sm:$0xff]
    %v24 = vld [vmem:[#allocation2 + $0x8] sm:$0xff]
    %v25 = vmul.f32 %v23, %v23
    %v26 = vmul.f32 %v24, %v24
    %vm27 = vcmask 261120
    %v28 = vsel %vm27, %v25, 0.0
    %29 = vadd.xlane.f32.xlu0 %v28
    %v30 = vpop.xlane.xlu0 %29
    %v31 = vsel %vm27, %v26, 0.0
    %32 = vadd.xlane.f32.xlu0 %v31
    %v33 = vpop.xlane.xlu0 %32
    %v34 = vrsqrt.pop %v30
    %v35 = vrsqrt.pop %v33
    %v36 = vmul.f32 %v34, 5.656854
    %v37 = vmul.f32 %v35, 5.656854
    %v38 = vmul.f32 %v23, %v36
    %v39 = vmul.f32 %v24, %v37
    %40 = vst.msk [vmem:[#allocation5] sm:$0xff] %vm27, %v38
    %41 = vst.msk [vmem:[#allocation5 + $0x8] sm:$0xff] %vm27, %v39
    // Predicated region
    $region10: #{tpu_custom_call.1} parent=1 // pred_check
      _
    $region11: #{tpu_custom_call.1} parent=1 // pred_check_branch
      %43 = sbr.rel (0) target = $region13
    $region12: #{tpu_custom_call.1} parent=1 // pred_region
      %s45 = ssub.s32 256, 256
      %46 = vsyncadd [#allocation4], %s45
      %s47 = sshll.u32 [#allocation5], 4
      %s48 = int_to_ptr.vmem [resolvable:$true] %s47
      %53 = dma.vmem_to_hbm [thread:$0]  %s48, 256, %s1, [#allocation4], 128, 128, 8
    $region13: #{tpu_custom_call.1} parent=1 // pred_fallthru
      _
    // Predicated region
    $region14: #{tpu_custom_call.1} parent=1 // pred_check
      _
    $region15: #{tpu_custom_call.1} parent=1 // pred_check_branch
      %55 = sbr.rel (0) target = $region17
    $region16: #{tpu_custom_call.1} parent=1 // pred_region
      %56 = dma.done [#allocation4], 256
    $region17: #{tpu_custom_call.1} parent=1 // pred_fallthru
      _
    %57 = vsyncpa [#allocation3], 1
    %58 = vsyncpa [#allocation4], 1

</llo_original>
